<compile_context>
chip_gen: v7x
topology: tpu7x:2x2x1
jax: 0.10.0
libtpu: 0.0.40
codegen_flags: <defaults>
</compile_context>

<pallas_src>
import math

import jax
import jax.numpy as jnp
from jax.experimental import pallas as pl
from jax.experimental.pallas import tpu as pltpu

_GELU_C1 = math.sqrt(2.0 / math.pi)
_GELU_C2 = 0.044715 * _GELU_C1


def _gelu(h):
    # tanh-approx gelu; sqrt(2/pi)*(h + 0.044715*h^3) == h*(c1 + c2*h*h)
    h2 = h * h
    return 0.5 * h * (1.0 + jnp.tanh(h * (_GELU_C1 + _GELU_C2 * h2)))


def _round_up(x, m):
    return (x + m - 1) // m * m


def _cdiv(a, b):
    return -(-a // b)


def _vmem_capacity_bytes():
    try:
        info = pltpu.get_tpu_info()
        for attr in ("vmem_capacity_bytes", "vmem_size_bytes", "vmem_bytes"):
            v = getattr(info, attr, None)
            if v:
                return int(v)
    except Exception:
        pass
    return 128 << 20  # v5e / v6e default


# ---------------------------------------------------------------------------
# Kernels
# ---------------------------------------------------------------------------
def ffn_kernel_resident(x_ref, w1t_ref, b1_ref, w2t_ref, b2_ref, o_ref):
    # Whole weights resident in VMEM (constant index_map); single fused FFN
    # per m-tile: no I-loop, no accumulator RMW.
    h = jnp.dot(x_ref[...], w1t_ref[...], preferred_element_type=jnp.float32)
    h = h + b1_ref[...].astype(jnp.float32)
    g = _gelu(h)
    # dropout: identity in eval mode (see TODO above)
    out = jnp.dot(g.astype(w2t_ref.dtype), w2t_ref[...],
                  preferred_element_type=jnp.float32)
    o_ref[...] = (out + b2_ref[...].astype(jnp.float32)).astype(o_ref.dtype)


def ffn_kernel_tiled(x_ref, w1t_ref, b1_ref, w2t_ref, b2_ref, o_ref, acc_ref):
    # x_ref:   [tm, Hp]   activation tile (native dtype), resident across i
    # w1t_ref: [Hp, ti]   pre-transposed w1 slice (standard [K, N])
    # b1_ref:  [1,  ti]
    # w2t_ref: [ti, Hp]   pre-transposed w2 slice (standard [K, N])
    # b2_ref:  [1,  Hp]
    # o_ref:   [tm, Hp]
    # acc_ref: [tm, Hp]   f32 accumulator (VMEM scratch), resident across i
    i = pl.program_id(1)

    @pl.when(i == 0)
    def _():
        acc_ref[...] = jnp.zeros_like(acc_ref)

    h = jnp.dot(x_ref[...], w1t_ref[...], preferred_element_type=jnp.float32)
    h = h + b1_ref[...].astype(jnp.float32)
    g = _gelu(h)
    # dropout: identity in eval mode (see TODO above)

    acc_ref[...] += jnp.dot(g.astype(w2t_ref.dtype), w2t_ref[...],
                            preferred_element_type=jnp.float32)

    @pl.when(i == pl.num_programs(1) - 1)
    def _():
        # b2 added exactly once, after the full I-reduction.
        o_ref[...] = (acc_ref[...] + b2_ref[...].astype(jnp.float32)).astype(o_ref.dtype)


# ---------------------------------------------------------------------------
# Wrapper
# ---------------------------------------------------------------------------
def positionwise_feed_forward(x, w1, b1, w2, b2, *, tile_m=None, tile_i=None,
                              force_tiled=False):
    """Eval-mode forward.  x: [..., H]; torch layouts: w1 [I,H], b1 [I], w2 [H,I], b2 [H]."""
    orig_shape = x.shape
    H = orig_shape[-1]
    I = w1.shape[0]
    x2d = x.reshape(-1, H)
    M = x2d.shape[0]
    itemsize = jnp.dtype(x.dtype).itemsize

    # --- per-generation VMEM budget ----------------------------------------
    phys_vmem = _vmem_capacity_bytes()
    if phys_vmem <= (64 << 20):            # v7x: 64 MiB per TensorCore
        tile_budget = 52 << 20             # leave headroom for Mosaic scratch
        vmem_limit = 60 << 20
    else:                                  # v5e / v6e: 128 MiB physical
        tile_budget = 96 << 20
        vmem_limit = 104 << 20

    # --- lane-dense padded hidden dim (256-aligned fills the 2x256x256 MXU) --
    Hp = _round_up(H, 256 if H > 128 else 128)

    # --- token tile: sublane packing per dtype; big default so weight
    #     re-streaming is amortized (primary tuning knob) ---------------------
    sub = {4: 8, 2: 16, 1: 32}.get(itemsize, 8)
    if tile_m is None:
        tile_m = 1024 if phys_vmem > (64 << 20) else 512
    tm = _round_up(max(1, min(tile_m, M)), sub)
    nm = _cdiv(M, tm)
    # guarantee >=2 iterations on the "parallel" m axis (v7x has 2 TensorCores)
    if nm < 2 and M >= 256:
        tm = max(128, _round_up(_cdiv(M, 2), sub))
        nm = _cdiv(M, tm)

    # --- intermediate tile ----------------------------------------------------
    if tile_i is None:
        tile_i = 1024
    ti = min(_round_up(tile_i, 128), _round_up(I, 128))

    # --- path selection: keep whole weights resident in VMEM when they fit ---
    Ip_full = _round_up(I, 256 if I > 128 else 128)
    resident_bytes = (2 * (2 * Hp * Ip_full + Ip_full + Hp)    # w1t,w2t,b1,b2 (x2 buffers)
                      + 2 * 2 * tm * Hp) * itemsize            # x + out, double-buffered
    use_resident = (not force_tiled) and resident_bytes <= int(0.9 * tile_budget)

    if use_resident:
        Ip = Ip_full
    else:
        # Shrink tiles (ti first, then tm) rather than clipping the VMEM limit.
        def footprint(tm_, ti_):
            return ((2 * (2 * tm_ * Hp + 2 * Hp * ti_ + ti_ + Hp)) * itemsize
                    + tm_ * Hp * 4)
        while footprint(tm, ti) > tile_budget and ti > 256:
            ti = _round_up(max(256, ti // 2), 128)
        while footprint(tm, ti) > tile_budget and tm > max(128, sub):
            tm = _round_up(max(128, tm // 2), sub)
        nm = _cdiv(M, tm)
        Ip = _round_up(I, ti)

    Mp = nm * tm

    # --- pad operands (zero padding is benign: gelu(0)=0, padded w2 rows zero) -
    x_p = jnp.pad(x2d, ((0, Mp - M), (0, Hp - H)))
    w1t = jnp.pad(w1.T, ((0, Hp - H), (0, Ip - I)))            # [Hp, Ip], standard [K,N]
    b1_p = jnp.pad(b1, (0, Ip - I)).reshape(1, Ip)
    w2t = jnp.pad(w2.T, ((0, Ip - I), (0, Hp - H)))            # [Ip, Hp], standard [K,N]
    b2_p = jnp.pad(b2, (0, Hp - H)).reshape(1, Hp)

    # --- cost estimate: count the real weight traffic ------------------------
    weight_passes = 1 if use_resident else nm
    cost = pl.CostEstimate(
        flops=4 * Mp * Hp * Ip,                                # two matmuls, 2*M*K*N each
        transcendentals=Mp * Ip,                               # one tanh per interm. element
        bytes_accessed=(2 * Mp * Hp
                        + weight_passes * (2 * Hp * Ip + Ip + Hp)) * itemsize,
    )

    if use_resident:
        out_p = pl.pallas_call(
            ffn_kernel_resident,
            out_shape=jax.ShapeDtypeStruct((Mp, Hp), x.dtype),
            grid_spec=pl.GridSpec(
                grid=(nm,),
                in_specs=[
                    pl.BlockSpec((tm, Hp), lambda m: (m, 0)),   # x tile
                    pl.BlockSpec((Hp, Ip), lambda m: (0, 0)),   # w1t (resident)
                    pl.BlockSpec((1, Ip),  lambda m: (0, 0)),   # b1  (resident)
                    pl.BlockSpec((Ip, Hp), lambda m: (0, 0)),   # w2t (resident)
                    pl.BlockSpec((1, Hp),  lambda m: (0, 0)),   # b2  (resident)
                ],
                out_specs=pl.BlockSpec((tm, Hp), lambda m: (m, 0)),
            ),
            compiler_params=pltpu.CompilerParams(
                dimension_semantics=("parallel",),
                vmem_limit_bytes=int(vmem_limit),
            ),
            cost_estimate=cost,
        )(x_p, w1t, b1_p, w2t, b2_p)
    else:
        out_p = pl.pallas_call(
            ffn_kernel_tiled,
            out_shape=jax.ShapeDtypeStruct((Mp, Hp), x.dtype),
            grid_spec=pl.GridSpec(
                grid=(nm, Ip // ti),
                in_specs=[
                    pl.BlockSpec((tm, Hp), lambda m, i: (m, 0)),   # x tile
                    pl.BlockSpec((Hp, ti), lambda m, i: (0, i)),   # w1t I-slice
                    pl.BlockSpec((1, ti),  lambda m, i: (0, i)),   # b1  I-slice
                    pl.BlockSpec((ti, Hp), lambda m, i: (i, 0)),   # w2t I-slice
                    pl.BlockSpec((1, Hp),  lambda m, i: (0, 0)),   # b2 (constant)
                ],
                out_specs=pl.BlockSpec((tm, Hp), lambda m, i: (m, 0)),
                scratch_shapes=[pltpu.VMEM((tm, Hp), jnp.float32)],
            ),
            compiler_params=pltpu.CompilerParams(
                dimension_semantics=("parallel", "arbitrary"),
                vmem_limit_bytes=int(vmem_limit),
            ),
            cost_estimate=cost,
        )(x_p, w1t, b1_p, w2t, b2_p)

    return out_p[:M, :H].reshape(orig_shape)


# ---------------------------------------------------------------------------
# Demo / self-check
# ---------------------------------------------------------------------------
if __name__ == "__main__":
    # Small synthetic config: hidden_size=32, intermediate_size=64
    hidden_size = 32
    intermediate_size = 64
    batch, seq = 2, 8

    key = jax.random.PRNGKey(0)
    k_x, k_w1, k_b1, k_w2, k_b2 = jax.random.split(key, 5)

    x = jax.random.normal(k_x, (batch, seq, hidden_size), dtype=jnp.float32)

    # Deterministic init mimicking nn.Linear default: U(-1/sqrt(fan_in), 1/sqrt(fan_in))
    bound1 = 1.0 / math.sqrt(hidden_size)
    w1 = jax.random.uniform(k_w1, (intermediate_size, hidden_size),
                            minval=-bound1, maxval=bound1, dtype=jnp.float32)
    b1 = jax.random.uniform(k_b1, (intermediate_size,),
                            minval=-bound1, maxval=bound1, dtype=jnp.float32)

    bound2 = 1.0 / math.sqrt(intermediate_size)
    w2 = jax.random.uniform(k_w2, (hidden_size, intermediate_size),
                            minval=-bound2, maxval=bound2, dtype=jnp.float32)
    b2 = jax.random.uniform(k_b2, (hidden_size,),
                            minval=-bound2, maxval=bound2, dtype=jnp.float32)

    # Pure-JAX reference (f32 operands -> tight tolerance is appropriate)
    def ref_gelu(t):
        return 0.5 * t * (1.0 + jnp.tanh(math.sqrt(2.0 / math.pi) * (t + 0.044715 * t ** 3)))
    ref = ref_gelu(x @ w1.T + b1) @ w2.T + b2

    # Resident-weight fast path (default for these small shapes)
    out = jax.block_until_ready(positionwise_feed_forward(x, w1, b1, w2, b2))
    assert out.shape == x.shape
    assert jnp.allclose(out, ref, atol=2e-5, rtol=2e-5), "mismatch vs reference (resident)"

    # Also exercise the tiled / accumulator path
    out_tiled = jax.block_until_ready(
        positionwise_feed_forward(x, w1, b1, w2, b2, force_tiled=True))
    assert jnp.allclose(out_tiled, ref, atol=2e-5, rtol=2e-5), "mismatch vs reference (tiled)"

    print("KERNEL_OK")
</pallas_src>

<mosaic_0001>
module attributes {stable_mosaic.version = 11 : i64} {
  func.func @ffn_kernel_resident(%arg0: i32, %arg1: memref<16x128xf32, #tpu.memory_space<vmem>>, %arg2: memref<128x128xf32, #tpu.memory_space<vmem>>, %arg3: memref<1x128xf32, #tpu.memory_space<vmem>>, %arg4: memref<128x128xf32, #tpu.memory_space<vmem>>, %arg5: memref<1x128xf32, #tpu.memory_space<vmem>>, %arg6: memref<16x128xf32, #tpu.memory_space<vmem>>) attributes {dimension_semantics = [#tpu.dimension_semantics<parallel>], iteration_bounds = array<i64: 1>, scalar_prefetch = 0 : i64, scratch_operands = 0 : i64, tpu.core_type = #tpu.core_type<tc>, window_params = [{transform_indices = @transform_0, window_bounds = array<i64: 16, 128>}, {pipeline_mode = #tpu.pipeline_mode<synchronous>, transform_indices = @transform_1, window_bounds = array<i64: 128, 128>}, {pipeline_mode = #tpu.pipeline_mode<synchronous>, transform_indices = @transform_2, window_bounds = array<i64: 1, 128>}, {pipeline_mode = #tpu.pipeline_mode<synchronous>, transform_indices = @transform_3, window_bounds = array<i64: 128, 128>}, {pipeline_mode = #tpu.pipeline_mode<synchronous>, transform_indices = @transform_4, window_bounds = array<i64: 1, 128>}, {transform_indices = @transform_5, window_bounds = array<i64: 16, 128>}]} {
    %c0 = arith.constant 0 : index
    %c0_0 = arith.constant 0 : index
    %0 = vector.load %arg1[%c0, %c0_0] : memref<16x128xf32, #tpu.memory_space<vmem>>, vector<16x128xf32>
    %c0_1 = arith.constant 0 : index
    %c0_2 = arith.constant 0 : index
    %1 = vector.load %arg2[%c0_1, %c0_2] : memref<128x128xf32, #tpu.memory_space<vmem>>, vector<128x128xf32>
    %cst = arith.constant dense<0.000000e+00> : vector<16x128xf32>
    %2 = tpu.matmul %0, %1, %cst {dimension_numbers = #tpu.dot_dimension_numbers<[1], [0], [0], [1], [0, 0, 1, 1], [], []>} : vector<16x128xf32>, vector<128x128xf32>, vector<16x128xf32> -> vector<16x128xf32>
    %c0_3 = arith.constant 0 : index
    %c0_4 = arith.constant 0 : index
    %3 = vector.load %arg3[%c0_3, %c0_4] : memref<1x128xf32, #tpu.memory_space<vmem>>, vector<1x128xf32>
    %4 = vector.broadcast %3 : vector<1x128xf32> to vector<16x128xf32>
    %5 = arith.addf %2, %4 : vector<16x128xf32>
    %6 = arith.mulf %5, %5 : vector<16x128xf32>
    %cst_5 = arith.constant 5.000000e-01 : f32
    %7 = vector.broadcast %cst_5 : f32 to vector<16x128xf32>
    %8 = arith.mulf %7, %5 : vector<16x128xf32>
    %cst_6 = arith.constant 0.0356774069 : f32
    %9 = vector.broadcast %cst_6 : f32 to vector<16x128xf32>
    %10 = arith.mulf %9, %6 : vector<16x128xf32>
    %cst_7 = arith.constant 0.797884583 : f32
    %11 = vector.broadcast %cst_7 : f32 to vector<16x128xf32>
    %12 = arith.addf %11, %10 : vector<16x128xf32>
    %13 = arith.mulf %5, %12 : vector<16x128xf32>
    %14 = math.tanh %13 : vector<16x128xf32>
    %cst_8 = arith.constant 1.000000e+00 : f32
    %15 = vector.broadcast %cst_8 : f32 to vector<16x128xf32>
    %16 = arith.addf %15, %14 : vector<16x128xf32>
    %17 = arith.mulf %8, %16 : vector<16x128xf32>
    %c0_9 = arith.constant 0 : index
    %c0_10 = arith.constant 0 : index
    %18 = vector.load %arg4[%c0_9, %c0_10] : memref<128x128xf32, #tpu.memory_space<vmem>>, vector<128x128xf32>
    %cst_11 = arith.constant dense<0.000000e+00> : vector<16x128xf32>
    %19 = tpu.matmul %17, %18, %cst_11 {dimension_numbers = #tpu.dot_dimension_numbers<[1], [0], [0], [1], [0, 0, 1, 1], [], []>} : vector<16x128xf32>, vector<128x128xf32>, vector<16x128xf32> -> vector<16x128xf32>
    %c0_12 = arith.constant 0 : index
    %c0_13 = arith.constant 0 : index
    %20 = vector.load %arg5[%c0_12, %c0_13] : memref<1x128xf32, #tpu.memory_space<vmem>>, vector<1x128xf32>
    %21 = vector.broadcast %20 : vector<1x128xf32> to vector<16x128xf32>
    %22 = arith.addf %19, %21 : vector<16x128xf32>
    %c0_14 = arith.constant 0 : index
    %c0_15 = arith.constant 0 : index
    %23 = vector.load %arg6[%c0_14, %c0_15] : memref<16x128xf32, #tpu.memory_space<vmem>>, vector<16x128xf32>
    tpu.vector_store %arg6[%c0_14, %c0_15], %22 {strides = array<i32>} : memref<16x128xf32, #tpu.memory_space<vmem>>, vector<16x128xf32>,
    return
  }
  func.func @transform_0(%arg0: i32) -> (i32, i32) {
    %c0_i32 = arith.constant 0 : i32
    %c0_i32_0 = arith.constant 0 : i32
    return %arg0, %c0_i32 : i32, i32
  }
  func.func @transform_1(%arg0: i32) -> (i32, i32) {
    %c0_i32 = arith.constant 0 : i32
    %c0_i32_0 = arith.constant 0 : i32
    %c0_i32_1 = arith.constant 0 : i32
    return %c0_i32, %c0_i32_0 : i32, i32
  }
  func.func @transform_2(%arg0: i32) -> (i32, i32) {
    %c0_i32 = arith.constant 0 : i32
    %c0_i32_0 = arith.constant 0 : i32
    %c0_i32_1 = arith.constant 0 : i32
    return %c0_i32, %c0_i32_0 : i32, i32
  }
  func.func @transform_3(%arg0: i32) -> (i32, i32) {
    %c0_i32 = arith.constant 0 : i32
    %c0_i32_0 = arith.constant 0 : i32
    %c0_i32_1 = arith.constant 0 : i32
    return %c0_i32, %c0_i32_0 : i32, i32
  }
  func.func @transform_4(%arg0: i32) -> (i32, i32) {
    %c0_i32 = arith.constant 0 : i32
    %c0_i32_0 = arith.constant 0 : i32
    %c0_i32_1 = arith.constant 0 : i32
    return %c0_i32, %c0_i32_0 : i32, i32
  }
  func.func @transform_5(%arg0: i32) -> (i32, i32) {
    %c0_i32 = arith.constant 0 : i32
    %c0_i32_0 = arith.constant 0 : i32
    return %arg0, %c0_i32 : i32, i32
  }
}

</mosaic_0001>

<llo_original>
// kernel: tpu_custom_call.1
$region0: #{tpu_custom_call.1}
  #allocation0 [shape = 'u32[]', space=smem, size = 0x4, offset = 0x4, fixed_abs, tag = 'smem constant byte address 0x4 - core index']
  #allocation1 [shape = 'u32[144,128]{1,0:T(1,128)}', space=vmem, size = 0x12000, scoped, tag = 'internal scratch']
  %s0 = inlined_call_operand.hbm [shape: f32[16,128], index: 0, kind: input, shape index: {}]
  %s1 = inlined_call_operand.hbm [shape: f32[128,128], index: 1, kind: input, shape index: {}]
  %s2 = inlined_call_operand.hbm [shape: f32[1,128], index: 2, kind: input, shape index: {}]
  %s3 = inlined_call_operand.hbm [shape: f32[128,128], index: 3, kind: input, shape index: {}]
  %s4 = inlined_call_operand.hbm [shape: f32[1,128], index: 4, kind: input, shape index: {}]
  %s5 = inlined_call_operand.hbm [shape: f32[16,128], index: 5, kind: output, shape index: {}]
  %s6 = sld [smem:[#allocation0]]
  $region50: #{tpu_custom_call.1} parent=0
    _
  %s8 = ssub.s32 1, %s6
  %s9 = scalar_select 0, %s8, %s6
  $region1: #{tpu_custom_call.1} parent=0
    #allocation2 [shape = 'u8[8192]{0}', space=vmem, size = 0x2000, scoped, tag = 'input window, operand 0, single buffered']
    #allocation3 [shape = 's32[1]{0}', space=sflag, size = 0x4, scoped, tag = 'scoped memory for tpu_custom_call.1']
    #allocation4 [shape = 's32[1]{0}', space=sflag, size = 0x4, scoped, tag = 'scoped memory for tpu_custom_call.1']
    #allocation5 [shape = 'u8[65536]{0}', space=vmem, size = 0x10000, scoped, tag = 'input window, operand 1, single buffered']
    #allocation6 [shape = 's32[1]{0}', space=sflag, size = 0x4, scoped, tag = 'scoped memory for tpu_custom_call.1']
    #allocation7 [shape = 'u8[512]{0}', space=vmem, size = 0x400, scoped, tag = 'input window, operand 2, single buffered']
    #allocation8 [shape = 'u8[65536]{0}', space=vmem, size = 0x10000, scoped, tag = 'input window, operand 3, single buffered']
    #allocation9 [shape = 's32[1]{0}', space=sflag, size = 0x4, scoped, tag = 'scoped memory for tpu_custom_call.1']
    #allocation10 [shape = 'u8[512]{0}', space=vmem, size = 0x400, scoped, tag = 'input window, operand 4, single buffered']
    #allocation11 [shape = 'u8[8192]{0}', space=vmem, size = 0x2000, scoped, tag = 'output window, operand 0, single buffered']
    %10 = vsyncpa [#allocation3], 0
    %11 = vsyncpa [#allocation6], 0
    %12 = vsyncpa [#allocation9], 0
    %13 = vsyncpa [#allocation4], 0
    // Predicated region
    $region2: #{tpu_custom_call.1} parent=1 // pred_check
      _
    $region3: #{tpu_custom_call.1} parent=1 // pred_check_branch
      %15 = sbr.rel (0) target = $region5
    $region4: #{tpu_custom_call.1} parent=1 // pred_region
      %s17 = ssub.s32 256, 256
      %18 = vsyncadd [#allocation3], %s17
      %s19 = sshll.u32 [#allocation2], 4
      %s20 = int_to_ptr.vmem [resolvable:$true] %s19
      %25 = dma.hbm_to_vmem [thread:$0]  %s0, 256, %s20, [#allocation3], 128, 128, 8
    $region5: #{tpu_custom_call.1} parent=1 // pred_fallthru
      _
    // Predicated region
    $region6: #{tpu_custom_call.1} parent=1 // pred_check
      _
    $region7: #{tpu_custom_call.1} parent=1 // pred_check_branch
      %27 = sbr.rel (0) target = $region9
    $region8: #{tpu_custom_call.1} parent=1 // pred_region
      %s29 = ssub.s32 2048, 2048
      %30 = vsyncadd [#allocation6], %s29
      %s31 = sshll.u32 [#allocation5], 4
      %s32 = int_to_ptr.vmem [resolvable:$true] %s31
      %37 = dma.hbm_to_vmem [thread:$0]  %s1, 2048, %s32, [#allocation6], 128, 128, 8
    $region9: #{tpu_custom_call.1} parent=1 // pred_fallthru
      _
    // Predicated region
    $region10: #{tpu_custom_call.1} parent=1 // pred_check
      _
    $region11: #{tpu_custom_call.1} parent=1 // pred_check_branch
      %39 = sbr.rel (0) target = $region13
    $region12: #{tpu_custom_call.1} parent=1 // pred_region
      %s41 = ssub.s32 16, 16
      %42 = vsyncadd [#allocation6], %s41
      %s44 = sshll.u32 [#allocation7], 4
      %s45 = int_to_ptr.vmem [resolvable:$true] %s44
      %47 = dma.hbm_to_vmem [thread:$0]  %s2, 16, %s45, [#allocation6]
    $region13: #{tpu_custom_call.1} parent=1 // pred_fallthru
      _
    // Predicated region
    $region14: #{tpu_custom_call.1} parent=1 // pred_check
      _
    $region15: #{tpu_custom_call.1} parent=1 // pred_check_branch
      %49 = sbr.rel (0) target = $region17
    $region16: #{tpu_custom_call.1} parent=1 // pred_region
      %s51 = ssub.s32 2048, 2048
      %52 = vsyncadd [#allocation9], %s51
      %s53 = sshll.u32 [#allocation8], 4
      %s54 = int_to_ptr.vmem [resolvable:$true] %s53
      %59 = dma.hbm_to_vmem [thread:$0]  %s3, 2048, %s54, [#allocation9], 128, 128, 8
    $region17: #{tpu_custom_call.1} parent=1 // pred_fallthru
      _
    // Predicated region
    $region18: #{tpu_custom_call.1} parent=1 // pred_check
      _
    $region19: #{tpu_custom_call.1} parent=1 // pred_check_branch
      %61 = sbr.rel (0) target = $region21
    $region20: #{tpu_custom_call.1} parent=1 // pred_region
      %s63 = ssub.s32 16, 16
      %64 = vsyncadd [#allocation9], %s63
      %s66 = sshll.u32 [#allocation10], 4
      %s67 = int_to_ptr.vmem [resolvable:$true] %s66
      %69 = dma.hbm_to_vmem [thread:$0]  %s4, 16, %s67, [#allocation9]
    $region21: #{tpu_custom_call.1} parent=1 // pred_fallthru
      _
    // Predicated region
    $region22: #{tpu_custom_call.1} parent=1 // pred_check
      _
    $region23: #{tpu_custom_call.1} parent=1 // pred_check_branch
      %71 = sbr.rel (0) target = $region25
    $region24: #{tpu_custom_call.1} parent=1 // pred_region
      %72 = dma.done [#allocation3], 256
    $region25: #{tpu_custom_call.1} parent=1 // pred_fallthru
      _
    // Predicated region
    $region26: #{tpu_custom_call.1} parent=1 // pred_check
      _
    $region27: #{tpu_custom_call.1} parent=1 // pred_check_branch
      %74 = sbr.rel (0) target = $region29
    $region28: #{tpu_custom_call.1} parent=1 // pred_region
      %75 = dma.done [#allocation6], 2048
    $region29: #{tpu_custom_call.1} parent=1 // pred_fallthru
      _
    // Predicated region
    $region30: #{tpu_custom_call.1} parent=1 // pred_check
      _
    $region31: #{tpu_custom_call.1} parent=1 // pred_check_branch
      %77 = sbr.rel (0) target = $region33
    $region32: #{tpu_custom_call.1} parent=1 // pred_region
      %78 = dma.done [#allocation6], 16
    $region33: #{tpu_custom_call.1} parent=1 // pred_fallthru
      _
    // Predicated region
    $region34: #{tpu_custom_call.1} parent=1 // pred_check
      _
    $region35: #{tpu_custom_call.1} parent=1 // pred_check_branch
      %80 = sbr.rel (0) target = $region37
    $region36: #{tpu_custom_call.1} parent=1 // pred_region
      %81 = dma.done [#allocation9], 2048
    $region37: #{tpu_custom_call.1} parent=1 // pred_fallthru
      _
    // Predicated region
    $region38: #{tpu_custom_call.1} parent=1 // pred_check
      _
    $region39: #{tpu_custom_call.1} parent=1 // pred_check_branch
      %83 = sbr.rel (0) target = $region41
    $region40: #{tpu_custom_call.1} parent=1 // pred_region
      %84 = dma.done [#allocation9], 16
    $region41: #{tpu_custom_call.1} parent=1 // pred_fallthru
      _
    %v85 = vld [vmem:[#allocation2] sm:$0xff]
    %v86 = vld [vmem:[#allocation2 + $0x8] sm:$0xff]
    %v87 = vld [vmem:[#allocation5] sm:$0xff]
    %v88 = vld [vmem:[#allocation5 + $0x8] sm:$0xff]
    %v89 = vld [vmem:[#allocation5 + $0x10] sm:$0xff]
    %v90 = vld [vmem:[#allocation5 + $0x18] sm:$0xff]
    %v91 = vld [vmem:[#allocation5 + $0x20] sm:$0xff]
    %v92 = vld [vmem:[#allocation5 + $0x28] sm:$0xff]
    %v93 = vld [vmem:[#allocation5 + $0x30] sm:$0xff]
    %v94 = vld [vmem:[#allocation5 + $0x38] sm:$0xff]
    %v95 = vld [vmem:[#allocation5 + $0x40] sm:$0xff]
    %v96 = vld [vmem:[#allocation5 + $0x48] sm:$0xff]
    %v97 = vld [vmem:[#allocation5 + $0x50] sm:$0xff]
    %v98 = vld [vmem:[#allocation5 + $0x58] sm:$0xff]
    %v99 = vld [vmem:[#allocation5 + $0x60] sm:$0xff]
    %v100 = vld [vmem:[#allocation5 + $0x68] sm:$0xff]
    %v101 = vld [vmem:[#allocation5 + $0x70] sm:$0xff]
    %v102 = vld [vmem:[#allocation5 + $0x78] sm:$0xff]
    %v103 = vld [vmem:[#allocation7] sm:$0x1]
    %v105 = vlaneseq
    %v106 = vshrl.u32 %v105, 7
    %v107 = vsub.s32 0, %v106
    %v108 = vrot.slane %v103, %v107
    %110 = vmatprep.subr.mxu0 0.0
    %111 = vmatpush1.msra.mxu0 %v87
    %112 = vmatprep.subr.mxu0 0.0
    %113 = vmatpush1.msra.mxu0 %v88
    %114 = vmatprep.subr.mxu0 0.0
    %115 = vmatpush1.msra.mxu0 %v89
    %116 = vmatprep.subr.mxu0 0.0
    %117 = vmatpush1.msra.mxu0 %v90
    %118 = vmatprep.subr.mxu0 0.0
    %119 = vmatpush1.msra.mxu0 %v91
    %120 = vmatprep.subr.mxu0 0.0
    %121 = vmatpush1.msra.mxu0 %v92
    %122 = vmatprep.subr.mxu0 0.0
    %123 = vmatpush1.msra.mxu0 %v93
    %124 = vmatprep.subr.mxu0 0.0
    %125 = vmatpush1.msra.mxu0 %v94
    %126 = vmatprep.subr.mxu0 0.0
    %127 = vmatpush1.msra.mxu0 %v95
    %128 = vmatprep.subr.mxu0 0.0
    %129 = vmatpush1.msra.mxu0 %v96
    %130 = vmatprep.subr.mxu0 0.0
    %131 = vmatpush1.msra.mxu0 %v97
    %132 = vmatprep.subr.mxu0 0.0
    %133 = vmatpush1.msra.mxu0 %v98
    %134 = vmatprep.subr.mxu0 0.0
    %135 = vmatpush1.msra.mxu0 %v99
    %136 = vmatprep.subr.mxu0 0.0
    %137 = vmatpush1.msra.mxu0 %v100
    %138 = vmatprep.subr.mxu0 0.0
    %139 = vmatpush1.msra.mxu0 %v101
    %140 = vmatprep.subr.mxu0 0.0
    %141 = vmatpush1.msra.mxu0 %v102
    %142 = vmatprep.subr.mxu0 0.0
    %143 = vmatpush1.msra.mxu0 0.0
    %144 = vmatprep.subr.mxu0 0.0
    %145 = vmatpush1.msra.mxu0 0.0
    %146 = vmatprep.subr.mxu0 0.0
    %147 = vmatpush1.msra.mxu0 0.0
    %148 = vmatprep.subr.mxu0 0.0
    %149 = vmatpush1.msra.mxu0 0.0
    %150 = vmatprep.subr.mxu0 0.0
    %151 = vmatpush1.msra.mxu0 0.0
    %152 = vmatprep.subr.mxu0 0.0
    %153 = vmatpush1.msra.mxu0 0.0
    %154 = vmatprep.subr.mxu0 0.0
    %155 = vmatpush1.msra.mxu0 0.0
    %156 = vmatprep.subr.mxu0 0.0
    %157 = vmatpush1.msra.mxu0 0.0
    %158 = vmatprep.subr.mxu0 0.0
    %159 = vmatpush1.msra.mxu0 0.0
    %160 = vmatprep.subr.mxu0 0.0
    %161 = vmatpush1.msra.mxu0 0.0
    %162 = vmatprep.subr.mxu0 0.0
    %163 = vmatpush1.msra.mxu0 0.0
    %164 = vmatprep.subr.mxu0 0.0
    %165 = vmatpush1.msra.mxu0 0.0
    %166 = vmatprep.subr.mxu0 0.0
    %167 = vmatpush1.msra.mxu0 0.0
    %168 = vmatprep.subr.mxu0 0.0
    %169 = vmatpush1.msra.mxu0 0.0
    %170 = vmatprep.subr.mxu0 0.0
    %171 = vmatpush1.msra.mxu0 0.0
    %172 = vmatprep.subr.mxu0 0.0
    %173 = vmatpush1.msra.mxu0 0.0
    %174 = vmatprep.mubr.f32.mxu0 0.0
    %175 = vmatmul.mubr.f32.gmra.mrb[0].mxu0 %v85
    %v176 = vpop.f32.mrb[0].mxu0
    %v177 = vadd.f32 %v108, %v176
    %v178 = vpop.f32.mrb[0].mxu0
    %179 = vmatprep.mubr.f32.mxu0 0.0
    %180 = vmatmul.mubr.f32.gmra.mrb[0].mxu0 %v86
    %v181 = vpop.f32.mrb[0].mxu0
    %v182 = vadd.f32 %v108, %v181
    %v183 = vpop.f32.mrb[0].mxu0
    %184 = vdwg.mxu0
    %v185 = vmul.f32 %v177, %v177
    %v186 = vmul.f32 %v182, %v182
    %v187 = vmul.f32 %v177, 0.5
    %v188 = vmul.f32 %v182, 0.5
    %v189 = vmul.f32 %v185, 0.035677407
    %v190 = vmul.f32 %v186, 0.035677407
    %v191 = vadd.f32 %v189, 0.7978846
    %v192 = vadd.f32 %v190, 0.7978846
    %v193 = vmul.f32 %v177, %v191
    %v194 = vmul.f32 %v182, %v192
    %v195 = vtanh.pop %v193
    %v196 = vtanh.pop %v194
    %v197 = vadd.f32 %v195, 1.0
    %v198 = vadd.f32 %v196, 1.0
    %v199 = vmul.f32 %v187, %v197
    %v200 = vmul.f32 %v188, %v198
    %v201 = vld [vmem:[#allocation8] sm:$0xff]
    %v202 = vld [vmem:[#allocation8 + $0x8] sm:$0xff]
    %v203 = vld [vmem:[#allocation8 + $0x10] sm:$0xff]
    %v204 = vld [vmem:[#allocation8 + $0x18] sm:$0xff]
    %v205 = vld [vmem:[#allocation8 + $0x20] sm:$0xff]
    %v206 = vld [vmem:[#allocation8 + $0x28] sm:$0xff]
    %v207 = vld [vmem:[#allocation8 + $0x30] sm:$0xff]
    %v208 = vld [vmem:[#allocation8 + $0x38] sm:$0xff]
    %v209 = vld [vmem:[#allocation8 + $0x40] sm:$0xff]
    %v210 = vld [vmem:[#allocation8 + $0x48] sm:$0xff]
    %v211 = vld [vmem:[#allocation8 + $0x50] sm:$0xff]
    %v212 = vld [vmem:[#allocation8 + $0x58] sm:$0xff]
    %v213 = vld [vmem:[#allocation8 + $0x60] sm:$0xff]
    %v214 = vld [vmem:[#allocation8 + $0x68] sm:$0xff]
    %v215 = vld [vmem:[#allocation8 + $0x70] sm:$0xff]
    %v216 = vld [vmem:[#allocation8 + $0x78] sm:$0xff]
    %v217 = vld [vmem:[#allocation10] sm:$0x1]
    %v219 = vlaneseq
    %v220 = vshrl.u32 %v219, 7
    %v221 = vsub.s32 0, %v220
    %v222 = vrot.slane %v217, %v221
    %224 = vmatprep.subr.mxu0 0.0
    %225 = vmatpush1.msra.mxu0 %v201
    %226 = vmatprep.subr.mxu0 0.0
    %227 = vmatpush1.msra.mxu0 %v202
    %228 = vmatprep.subr.mxu0 0.0
    %229 = vmatpush1.msra.mxu0 %v203
    %230 = vmatprep.subr.mxu0 0.0
    %231 = vmatpush1.msra.mxu0 %v204
    %232 = vmatprep.subr.mxu0 0.0
    %233 = vmatpush1.msra.mxu0 %v205
    %234 = vmatprep.subr.mxu0 0.0
    %235 = vmatpush1.msra.mxu0 %v206
    %236 = vmatprep.subr.mxu0 0.0
    %237 = vmatpush1.msra.mxu0 %v207
    %238 = vmatprep.subr.mxu0 0.0
    %239 = vmatpush1.msra.mxu0 %v208
    %240 = vmatprep.subr.mxu0 0.0
    %241 = vmatpush1.msra.mxu0 %v209
    %242 = vmatprep.subr.mxu0 0.0
    %243 = vmatpush1.msra.mxu0 %v210
    %244 = vmatprep.subr.mxu0 0.0
    %245 = vmatpush1.msra.mxu0 %v211
    %246 = vmatprep.subr.mxu0 0.0
    %247 = vmatpush1.msra.mxu0 %v212
    %248 = vmatprep.subr.mxu0 0.0
    %249 = vmatpush1.msra.mxu0 %v213
    %250 = vmatprep.subr.mxu0 0.0
    %251 = vmatpush1.msra.mxu0 %v214
    %252 = vmatprep.subr.mxu0 0.0
    %253 = vmatpush1.msra.mxu0 %v215
    %254 = vmatprep.subr.mxu0 0.0
    %255 = vmatpush1.msra.mxu0 %v216
    %256 = vmatprep.subr.mxu0 0.0
    %257 = vmatpush1.msra.mxu0 0.0
    %258 = vmatprep.subr.mxu0 0.0
    %259 = vmatpush1.msra.mxu0 0.0
    %260 = vmatprep.subr.mxu0 0.0
    %261 = vmatpush1.msra.mxu0 0.0
    %262 = vmatprep.subr.mxu0 0.0
    %263 = vmatpush1.msra.mxu0 0.0
    %264 = vmatprep.subr.mxu0 0.0
    %265 = vmatpush1.msra.mxu0 0.0
    %266 = vmatprep.subr.mxu0 0.0
    %267 = vmatpush1.msra.mxu0 0.0
    %268 = vmatprep.subr.mxu0 0.0
    %269 = vmatpush1.msra.mxu0 0.0
    %270 = vmatprep.subr.mxu0 0.0
    %271 = vmatpush1.msra.mxu0 0.0
    %272 = vmatprep.subr.mxu0 0.0
    %273 = vmatpush1.msra.mxu0 0.0
    %274 = vmatprep.subr.mxu0 0.0
    %275 = vmatpush1.msra.mxu0 0.0
    %276 = vmatprep.subr.mxu0 0.0
    %277 = vmatpush1.msra.mxu0 0.0
    %278 = vmatprep.subr.mxu0 0.0
    %279 = vmatpush1.msra.mxu0 0.0
    %280 = vmatprep.subr.mxu0 0.0
    %281 = vmatpush1.msra.mxu0 0.0
    %282 = vmatprep.subr.mxu0 0.0
    %283 = vmatpush1.msra.mxu0 0.0
    %284 = vmatprep.subr.mxu0 0.0
    %285 = vmatpush1.msra.mxu0 0.0
    %286 = vmatprep.subr.mxu0 0.0
    %287 = vmatpush1.msra.mxu0 0.0
    %288 = vmatprep.mubr.f32.mxu0 0.0
    %289 = vmatmul.mubr.f32.gmra.mrb[0].mxu0 %v199
    %v290 = vpop.f32.mrb[0].mxu0
    %v291 = vadd.f32 %v222, %v290
    %v292 = vpop.f32.mrb[0].mxu0
    %293 = vmatprep.mubr.f32.mxu0 0.0
    %294 = vmatmul.mubr.f32.gmra.mrb[0].mxu0 %v200
    %v295 = vpop.f32.mrb[0].mxu0
    %v296 = vadd.f32 %v222, %v295
    %v297 = vpop.f32.mrb[0].mxu0
    %298 = vdwg.mxu0
    %299 = vst [vmem:[#allocation11] sm:$0xff] %v291
    %300 = vst [vmem:[#allocation11 + $0x8] sm:$0xff] %v296
    // Predicated region
    $region42: #{tpu_custom_call.1} parent=1 // pred_check
      _
    $region43: #{tpu_custom_call.1} parent=1 // pred_check_branch
      %302 = sbr.rel (0) target = $region45
    $region44: #{tpu_custom_call.1} parent=1 // pred_region
      %s304 = ssub.s32 256, 256
      %305 = vsyncadd [#allocation4], %s304
      %s306 = sshll.u32 [#allocation11], 4
      %s307 = int_to_ptr.vmem [resolvable:$true] %s306
      %312 = dma.vmem_to_hbm [thread:$0]  %s307, 256, %s5, [#allocation4], 128, 128, 8
    $region45: #{tpu_custom_call.1} parent=1 // pred_fallthru
      _
    // Predicated region
    $region46: #{tpu_custom_call.1} parent=1 // pred_check
      _
    $region47: #{tpu_custom_call.1} parent=1 // pred_check_branch
      %314 = sbr.rel (0) target = $region49
    $region48: #{tpu_custom_call.1} parent=1 // pred_region
      %315 = dma.done [#allocation4], 256
    $region49: #{tpu_custom_call.1} parent=1 // pred_fallthru
      _
    %316 = vsyncpa [#allocation3], 1
    %317 = vsyncpa [#allocation6], 1
    %318 = vsyncpa [#allocation9], 1
    %319 = vsyncpa [#allocation4], 1

</llo_original>
